<compile_context>
chip_gen: v7x
topology: tpu7x:2x2x1
jax: 0.10.0
libtpu: 0.0.40
codegen_flags: <defaults>
</compile_context>

<pallas_src>
import jax
import jax.numpy as jnp
from jax import lax
from jax.experimental import pallas as pl
from jax.experimental.pallas import tpu as pltpu

LANES = 128
# Rows (of 128 lanes) per grid step.  With (8,128) accumulators the live VMEM at
# 2048 rows is ~4 MiB (two f32 input streams, double-buffered) — well under the
# 32 MiB default scoped VMEM on v5e/v6e/v7x, so no vmem_limit_bytes override.
MAX_BLOCK_ROWS = 2048
# Leading "parallel" grid axis: shards rows across v7x's 2 TensorCores (megacore).
NUM_PARTS = 2
SMOOTH = 1e-5  # matches the reference BCEDiceLoss (some PyTorch variants use 1.0)


def _cdiv(a, b):
    return -(-a // b)


def _round_up(n, m):
    return _cdiv(n, m) * m


def bce_dice_loss(inputs, targets, *, smooth=SMOOTH):
    """BCEWithLogitsLoss(mean) + Dice loss, computed in one Pallas streaming pass."""
    assert inputs.shape == targets.shape
    count = int(inputs.size)  # static number of valid elements (Python int)

    # Stream both tensors in their native dtype (upcast happens in-kernel on the
    # VPU) — no extra HBM convert pass.
    x = inputs.reshape(-1)
    t = targets.reshape(-1)

    lane_pad = (-count) % LANES
    if lane_pad:
        # TODO(synk): non-lane-aligned element counts still need one small pad copy
        # to form a 2-D lane-dense view; typical NCHW segmentation shapes
        # (H*W a multiple of 128) take the zero-copy path below.
        x = jnp.pad(x, (0, lane_pad))
        t = jnp.pad(t, (0, lane_pad))
    rows = (count + lane_pad) // LANES
    x = x.reshape(rows, LANES)   # free reshape in the common (lane-aligned) case
    t = t.reshape(rows, LANES)

    block_rows = min(MAX_BLOCK_ROWS, _round_up(rows, 16))  # mult of 16: bf16-safe
    block_elems = block_rows * LANES
    total_blocks = _cdiv(rows, block_rows)
    steps_per_part = _cdiv(total_blocks, NUM_PARTS)
    last_block = total_blocks - 1

    def kernel(x_ref, t_ref, bce_out, inter_out, denom_out):
        p = pl.program_id(0)
        s = pl.program_id(1)

        # Per-part (8,128) accumulators live directly in the output blocks, which
        # are resident across the (arbitrary) reduction axis.
        @pl.when(s == 0)
        def _init():
            bce_out[...] = jnp.zeros_like(bce_out)
            inter_out[...] = jnp.zeros_like(inter_out)
            denom_out[...] = jnp.zeros_like(denom_out)

        xv = x_ref[...].astype(jnp.float32)
        tv = t_ref[...].astype(jnp.float32)

        # One shared transcendental: e = exp(-|x|) feeds both the stable BCE
        # log-term and the sigmoid.  The divide is an approx reciprocal (EUP vrcp,
        # separate slot) refined by one Newton step on the VPU.
        e = jnp.exp(-jnp.abs(xv))
        d = 1.0 + e
        inv0 = pl.reciprocal(d, approx=True)
        inv = inv0 * (2.0 - d * inv0)            # Newton-Raphson: ~1e-7 rel. error
        sig = jnp.where(xv >= 0.0, inv, e * inv)
        bce = jnp.maximum(xv, 0.0) - xv * tv + jnp.log1p(e)
        inter = sig * tv
        denom = sig + tv

        start = (p * steps_per_part + s) * block_elems   # unclamped global offset
        is_full = start + block_elems <= count

        def tree(v):
            # Tree-reduce (block_rows,128) -> (8,128): pure VALU vreg adds, no
            # cross-lane work and no per-chunk accumulator VMEM traffic.
            return v.reshape(-1, 8, LANES).sum(axis=0)

        @pl.when(is_full)
        def _acc_full():
            bce_out[...] += tree(bce)
            inter_out[...] += tree(inter)
            denom_out[...] += tree(denom)

        # Ragged tail / clamped redundant blocks: mask all three partial sums by
        # the static element count.  Only this one block pays for the iota+selects.
        @pl.when(jnp.logical_not(is_full))
        def _acc_partial():
            rid = lax.broadcasted_iota(jnp.int32, (block_rows, LANES), 0)
            lid = lax.broadcasted_iota(jnp.int32, (block_rows, LANES), 1)
            valid = (start + rid * LANES + lid) < count
            bce_out[...] += tree(jnp.where(valid, bce, 0.0))
            inter_out[...] += tree(jnp.where(valid, inter, 0.0))
            denom_out[...] += tree(jnp.where(valid, denom, 0.0))

    def data_index(p, s):
        # Clamp so every DMA stays within the array; the kernel masks clamped
        # (redundant) steps to zero via the unclamped `start` above.
        return (jnp.minimum(p * steps_per_part + s, last_block), 0)

    # Optional on v7x: pipeline_mode=pl.Buffered(3) here if DMA is still exposed.
    data_spec = pl.BlockSpec((block_rows, LANES), data_index)
    part_spec = pl.BlockSpec((None, 8, LANES), lambda p, s: (p, 0, 0))
    part_shape = jax.ShapeDtypeStruct((NUM_PARTS, 8, LANES), jnp.float32)

    bce_p, inter_p, denom_p = pl.pallas_call(
        kernel,
        out_shape=(part_shape, part_shape, part_shape),
        grid=(NUM_PARTS, steps_per_part),
        in_specs=[data_spec, data_spec],
        out_specs=(part_spec, part_spec, part_spec),
        compiler_params=pltpu.CompilerParams(
            # If the Mosaic dump shows the part axis is not split across the two
            # v7x TensorCores, switch the first entry to pltpu.CORE_PARALLEL.
            dimension_semantics=("parallel", "arbitrary")),
    )(x, t)

    # Combine the per-part (8,128) partial-sum blocks (a few KiB) outside.
    bce_sum = jnp.sum(bce_p)
    inter_sum = jnp.sum(inter_p)
    denom_sum = jnp.sum(denom_p)

    bce_loss = bce_sum / jnp.float32(count)
    dice_loss = 1.0 - (2.0 * inter_sum + smooth) / (denom_sum + smooth)
    return bce_loss + dice_loss


def _reference(inputs, targets):
    x = inputs.astype(jnp.float32)
    t = targets.astype(jnp.float32)
    bce = jnp.mean(jnp.maximum(x, 0.0) - x * t + jnp.log1p(jnp.exp(-jnp.abs(x))))
    sig = jax.nn.sigmoid(x)
    inter = jnp.sum(sig * t)
    dice = 1.0 - (2.0 * inter + SMOOTH) / (jnp.sum(sig) + jnp.sum(t) + SMOOTH)
    return bce + dice


if __name__ == "__main__":
    key = jax.random.PRNGKey(0)
    k1, k2, k3, k4 = jax.random.split(key, 4)

    # Small segmentation-style shapes (NCHW), consistent with the training script.
    # count = 2048 (lane-aligned) -> zero-copy path, one full block + one masked
    # redundant block for the second part.
    logits = jax.random.normal(k1, (2, 4, 16, 16), dtype=jnp.float32)
    targets = (jax.random.uniform(k2, (2, 4, 16, 16)) > 0.5).astype(jnp.float32)
    loss = jax.block_until_ready(bce_dice_loss(logits, targets))
    ref = jax.block_until_ready(_reference(logits, targets))
    assert jnp.allclose(loss, ref, rtol=1e-5, atol=1e-5), (loss, ref)

    # Odd, non-lane-aligned shape exercises the in-kernel masked ragged-tail path.
    logits2 = jax.random.normal(k3, (1, 3, 13, 7), dtype=jnp.float32)
    targets2 = (jax.random.uniform(k4, (1, 3, 13, 7)) > 0.5).astype(jnp.float32)
    loss2 = jax.block_until_ready(bce_dice_loss(logits2, targets2))
    ref2 = jax.block_until_ready(_reference(logits2, targets2))
    assert jnp.allclose(loss2, ref2, rtol=1e-5, atol=1e-5), (loss2, ref2)

    print("KERNEL_OK")
</pallas_src>

<mosaic_0001>
module attributes {stable_mosaic.version = 11 : i64} {
  func.func @kernel(%arg0: i32, %arg1: i32, %arg2: memref<16x128xf32, #tpu.memory_space<vmem>>, %arg3: memref<16x128xf32, #tpu.memory_space<vmem>>, %arg4: memref<1x8x128xf32, #tpu.memory_space<vmem>>, %arg5: memref<1x8x128xf32, #tpu.memory_space<vmem>>, %arg6: memref<1x8x128xf32, #tpu.memory_space<vmem>>) attributes {dimension_semantics = [#tpu.dimension_semantics<parallel>, #tpu.dimension_semantics<arbitrary>], iteration_bounds = array<i64: 2, 1>, scalar_prefetch = 0 : i64, scratch_operands = 0 : i64, tpu.core_type = #tpu.core_type<tc>, window_params = [{transform_indices = @transform_0, window_bounds = array<i64: 16, 128>}, {transform_indices = @transform_1, window_bounds = array<i64: 16, 128>}, {transform_indices = @transform_2, window_bounds = array<i64: 1, 8, 128>}, {transform_indices = @transform_3, window_bounds = array<i64: 1, 8, 128>}, {transform_indices = @transform_4, window_bounds = array<i64: 1, 8, 128>}]} {
    %c0_i32 = arith.constant 0 : i32
    %0 = arith.cmpi eq, %arg1, %c0_i32 : i32
    %1 = arith.extui %0 : i1 to i32
    %c0_i32_0 = arith.constant 0 : i32
    %2 = arith.cmpi ne, %1, %c0_i32_0 : i32
    scf.if %2 {
      %cst_12 = arith.constant 0.000000e+00 : f32
      %38 = vector.broadcast %cst_12 : f32 to vector<8x128xf32>
      %c0_13 = arith.constant 0 : index
      %c0_14 = arith.constant 0 : index
      %c0_15 = arith.constant 0 : index
      %39 = vector.load %arg4[%c0_13, %c0_14, %c0_15] : memref<1x8x128xf32, #tpu.memory_space<vmem>>, vector<1x8x128xf32>
      %40 = vector.shape_cast %39 : vector<1x8x128xf32> to vector<8x128xf32>
      %41 = vector.shape_cast %38 : vector<8x128xf32> to vector<1x8x128xf32>
      tpu.vector_store %arg4[%c0_13, %c0_14, %c0_15], %41 {strides = array<i32>} : memref<1x8x128xf32, #tpu.memory_space<vmem>>, vector<1x8x128xf32>,
      %cst_16 = arith.constant 0.000000e+00 : f32
      %42 = vector.broadcast %cst_16 : f32 to vector<8x128xf32>
      %c0_17 = arith.constant 0 : index
      %c0_18 = arith.constant 0 : index
      %c0_19 = arith.constant 0 : index
      %43 = vector.load %arg5[%c0_17, %c0_18, %c0_19] : memref<1x8x128xf32, #tpu.memory_space<vmem>>, vector<1x8x128xf32>
      %44 = vector.shape_cast %43 : vector<1x8x128xf32> to vector<8x128xf32>
      %45 = vector.shape_cast %42 : vector<8x128xf32> to vector<1x8x128xf32>
      tpu.vector_store %arg5[%c0_17, %c0_18, %c0_19], %45 {strides = array<i32>} : memref<1x8x128xf32, #tpu.memory_space<vmem>>, vector<1x8x128xf32>,
      %cst_20 = arith.constant 0.000000e+00 : f32
      %46 = vector.broadcast %cst_20 : f32 to vector<8x128xf32>
      %c0_21 = arith.constant 0 : index
      %c0_22 = arith.constant 0 : index
      %c0_23 = arith.constant 0 : index
      %47 = vector.load %arg6[%c0_21, %c0_22, %c0_23] : memref<1x8x128xf32, #tpu.memory_space<vmem>>, vector<1x8x128xf32>
      %48 = vector.shape_cast %47 : vector<1x8x128xf32> to vector<8x128xf32>
      %49 = vector.shape_cast %46 : vector<8x128xf32> to vector<1x8x128xf32>
      tpu.vector_store %arg6[%c0_21, %c0_22, %c0_23], %49 {strides = array<i32>} : memref<1x8x128xf32, #tpu.memory_space<vmem>>, vector<1x8x128xf32>,
    } else {
    }
    %c0 = arith.constant 0 : index
    %c0_1 = arith.constant 0 : index
    %3 = vector.load %arg2[%c0, %c0_1] : memref<16x128xf32, #tpu.memory_space<vmem>>, vector<16x128xf32>
    %c0_2 = arith.constant 0 : index
    %c0_3 = arith.constant 0 : index
    %4 = vector.load %arg3[%c0_2, %c0_3] : memref<16x128xf32, #tpu.memory_space<vmem>>, vector<16x128xf32>
    %5 = math.absf %3 : vector<16x128xf32>
    %cst = arith.constant 0.000000e+00 : f32
    %6 = vector.broadcast %cst : f32 to vector<16x128xf32>
    %7 = arith.subf %6, %5 : vector<16x128xf32>
    %8 = math.exp %7 : vector<16x128xf32>
    %cst_4 = arith.constant 1.000000e+00 : f32
    %9 = vector.broadcast %cst_4 : f32 to vector<16x128xf32>
    %10 = arith.addf %9, %8 : vector<16x128xf32>
    %11 = tpu.reciprocal %10 {approx = true} : vector<16x128xf32> -> vector<16x128xf32>
    %12 = arith.mulf %10, %11 : vector<16x128xf32>
    %cst_5 = arith.constant 2.000000e+00 : f32
    %13 = vector.broadcast %cst_5 : f32 to vector<16x128xf32>
    %14 = arith.subf %13, %12 : vector<16x128xf32>
    %15 = arith.mulf %11, %14 : vector<16x128xf32>
    %cst_6 = arith.constant 0.000000e+00 : f32
    %16 = vector.broadcast %cst_6 : f32 to vector<16x128xf32>
    %17 = arith.cmpf oge, %3, %16 : vector<16x128xf32>
    %18 = arith.mulf %8, %15 : vector<16x128xf32>
    %19 = arith.select %17, %15, %18 : vector<16x128xi1>, vector<16x128xf32>
    %cst_7 = arith.constant 0.000000e+00 : f32
    %20 = vector.broadcast %cst_7 : f32 to vector<16x128xf32>
    %21 = arith.maximumf %3, %20 : vector<16x128xf32>
    %22 = arith.mulf %3, %4 : vector<16x128xf32>
    %23 = arith.subf %21, %22 : vector<16x128xf32>
    %24 = math.log1p %8 : vector<16x128xf32>
    %25 = arith.addf %23, %24 : vector<16x128xf32>
    %26 = arith.mulf %19, %4 : vector<16x128xf32>
    %27 = arith.addf %19, %4 : vector<16x128xf32>
    %c1_i32 = arith.constant 1 : i32
    %28 = arith.muli %arg0, %c1_i32 : i32
    %29 = arith.addi %28, %arg1 : i32
    %c2048_i32 = arith.constant 2048 : i32
    %30 = arith.muli %29, %c2048_i32 : i32
    %c2048_i32_8 = arith.constant 2048 : i32
    %31 = arith.addi %30, %c2048_i32_8 : i32
    %c2048_i32_9 = arith.constant 2048 : i32
    %32 = arith.cmpi sle, %31, %c2048_i32_9 : i32
    %33 = arith.extui %32 : i1 to i32
    %c0_i32_10 = arith.constant 0 : i32
    %34 = arith.cmpi ne, %33, %c0_i32_10 : i32
    scf.if %34 {
      %c0_12 = arith.constant 0 : index
      %c0_13 = arith.constant 0 : index
      %c0_14 = arith.constant 0 : index
      %38 = vector.load %arg4[%c0_12, %c0_13, %c0_14] : memref<1x8x128xf32, #tpu.memory_space<vmem>>, vector<1x8x128xf32>
      %39 = vector.shape_cast %38 : vector<1x8x128xf32> to vector<8x128xf32>
      %40 = vector.shape_cast %25 : vector<16x128xf32> to vector<2x8x128xf32>
      %cst_15 = arith.constant dense<0.000000e+00> : vector<8x128xf32>
      %41 = vector.multi_reduction <add>, %40, %cst_15 [0] : vector<2x8x128xf32> to vector<8x128xf32>
      %42 = arith.addf %39, %41 : vector<8x128xf32>
      %c0_16 = arith.constant 0 : index
      %c0_17 = arith.constant 0 : index
      %c0_18 = arith.constant 0 : index
      %43 = vector.load %arg4[%c0_16, %c0_17, %c0_18] : memref<1x8x128xf32, #tpu.memory_space<vmem>>, vector<1x8x128xf32>
      %44 = vector.shape_cast %43 : vector<1x8x128xf32> to vector<8x128xf32>
      %45 = vector.shape_cast %42 : vector<8x128xf32> to vector<1x8x128xf32>
      tpu.vector_store %arg4[%c0_16, %c0_17, %c0_18], %45 {strides = array<i32>} : memref<1x8x128xf32, #tpu.memory_space<vmem>>, vector<1x8x128xf32>,
      %c0_19 = arith.constant 0 : index
      %c0_20 = arith.constant 0 : index
      %c0_21 = arith.constant 0 : index
      %46 = vector.load %arg5[%c0_19, %c0_20, %c0_21] : memref<1x8x128xf32, #tpu.memory_space<vmem>>, vector<1x8x128xf32>
      %47 = vector.shape_cast %46 : vector<1x8x128xf32> to vector<8x128xf32>
      %48 = vector.shape_cast %26 : vector<16x128xf32> to vector<2x8x128xf32>
      %cst_22 = arith.constant dense<0.000000e+00> : vector<8x128xf32>
      %49 = vector.multi_reduction <add>, %48, %cst_22 [0] : vector<2x8x128xf32> to vector<8x128xf32>
      %50 = arith.addf %47, %49 : vector<8x128xf32>
      %c0_23 = arith.constant 0 : index
      %c0_24 = arith.constant 0 : index
      %c0_25 = arith.constant 0 : index
      %51 = vector.load %arg5[%c0_23, %c0_24, %c0_25] : memref<1x8x128xf32, #tpu.memory_space<vmem>>, vector<1x8x128xf32>
      %52 = vector.shape_cast %51 : vector<1x8x128xf32> to vector<8x128xf32>
      %53 = vector.shape_cast %50 : vector<8x128xf32> to vector<1x8x128xf32>
      tpu.vector_store %arg5[%c0_23, %c0_24, %c0_25], %53 {strides = array<i32>} : memref<1x8x128xf32, #tpu.memory_space<vmem>>, vector<1x8x128xf32>,
      %c0_26 = arith.constant 0 : index
      %c0_27 = arith.constant 0 : index
      %c0_28 = arith.constant 0 : index
      %54 = vector.load %arg6[%c0_26, %c0_27, %c0_28] : memref<1x8x128xf32, #tpu.memory_space<vmem>>, vector<1x8x128xf32>
      %55 = vector.shape_cast %54 : vector<1x8x128xf32> to vector<8x128xf32>
      %56 = vector.shape_cast %27 : vector<16x128xf32> to vector<2x8x128xf32>
      %cst_29 = arith.constant dense<0.000000e+00> : vector<8x128xf32>
      %57 = vector.multi_reduction <add>, %56, %cst_29 [0] : vector<2x8x128xf32> to vector<8x128xf32>
      %58 = arith.addf %55, %57 : vector<8x128xf32>
      %c0_30 = arith.constant 0 : index
      %c0_31 = arith.constant 0 : index
      %c0_32 = arith.constant 0 : index
      %59 = vector.load %arg6[%c0_30, %c0_31, %c0_32] : memref<1x8x128xf32, #tpu.memory_space<vmem>>, vector<1x8x128xf32>
      %60 = vector.shape_cast %59 : vector<1x8x128xf32> to vector<8x128xf32>
      %61 = vector.shape_cast %58 : vector<8x128xf32> to vector<1x8x128xf32>
      tpu.vector_store %arg6[%c0_30, %c0_31, %c0_32], %61 {strides = array<i32>} : memref<1x8x128xf32, #tpu.memory_space<vmem>>, vector<1x8x128xf32>,
    } else {
    }
    %true = arith.constant true
    %35 = arith.xori %32, %true : i1
    %36 = arith.extui %35 : i1 to i32
    %c0_i32_11 = arith.constant 0 : i32
    %37 = arith.cmpi ne, %36, %c0_i32_11 : i32
    scf.if %37 {
      %38 = tpu.iota {dimensions = array<i32: 0>} : vector<16x128xi32>
      %39 = tpu.iota {dimensions = array<i32: 1>} : vector<16x128xi32>
      %c128_i32 = arith.constant 128 : i32
      %40 = vector.broadcast %c128_i32 : i32 to vector<16x128xi32>
      %41 = arith.muli %38, %40 : vector<16x128xi32>
      %42 = vector.broadcast %30 : i32 to vector<16x128xi32>
      %43 = arith.addi %42, %41 : vector<16x128xi32>
      %44 = arith.addi %43, %39 : vector<16x128xi32>
      %c2048_i32_12 = arith.constant 2048 : i32
      %45 = vector.broadcast %c2048_i32_12 : i32 to vector<16x128xi32>
      %46 = arith.cmpi slt, %44, %45 : vector<16x128xi32>
      %c0_13 = arith.constant 0 : index
      %c0_14 = arith.constant 0 : index
      %c0_15 = arith.constant 0 : index
      %47 = vector.load %arg4[%c0_13, %c0_14, %c0_15] : memref<1x8x128xf32, #tpu.memory_space<vmem>>, vector<1x8x128xf32>
      %48 = vector.shape_cast %47 : vector<1x8x128xf32> to vector<8x128xf32>
      %cst_16 = arith.constant 0.000000e+00 : f32
      %49 = vector.broadcast %cst_16 : f32 to vector<16x128xf32>
      %50 = arith.select %46, %25, %49 : vector<16x128xi1>, vector<16x128xf32>
      %51 = vector.shape_cast %50 : vector<16x128xf32> to vector<2x8x128xf32>
      %cst_17 = arith.constant dense<0.000000e+00> : vector<8x128xf32>
      %52 = vector.multi_reduction <add>, %51, %cst_17 [0] : vector<2x8x128xf32> to vector<8x128xf32>
      %53 = arith.addf %48, %52 : vector<8x128xf32>
      %c0_18 = arith.constant 0 : index
      %c0_19 = arith.constant 0 : index
      %c0_20 = arith.constant 0 : index
      %54 = vector.load %arg4[%c0_18, %c0_19, %c0_20] : memref<1x8x128xf32, #tpu.memory_space<vmem>>, vector<1x8x128xf32>
      %55 = vector.shape_cast %54 : vector<1x8x128xf32> to vector<8x128xf32>
      %56 = vector.shape_cast %53 : vector<8x128xf32> to vector<1x8x128xf32>
      tpu.vector_store %arg4[%c0_18, %c0_19, %c0_20], %56 {strides = array<i32>} : memref<1x8x128xf32, #tpu.memory_space<vmem>>, vector<1x8x128xf32>,
      %c0_21 = arith.constant 0 : index
      %c0_22 = arith.constant 0 : index
      %c0_23 = arith.constant 0 : index
      %57 = vector.load %arg5[%c0_21, %c0_22, %c0_23] : memref<1x8x128xf32, #tpu.memory_space<vmem>>, vector<1x8x128xf32>
      %58 = vector.shape_cast %57 : vector<1x8x128xf32> to vector<8x128xf32>
      %cst_24 = arith.constant 0.000000e+00 : f32
      %59 = vector.broadcast %cst_24 : f32 to vector<16x128xf32>
      %60 = arith.select %46, %26, %59 : vector<16x128xi1>, vector<16x128xf32>
      %61 = vector.shape_cast %60 : vector<16x128xf32> to vector<2x8x128xf32>
      %cst_25 = arith.constant dense<0.000000e+00> : vector<8x128xf32>
      %62 = vector.multi_reduction <add>, %61, %cst_25 [0] : vector<2x8x128xf32> to vector<8x128xf32>
      %63 = arith.addf %58, %62 : vector<8x128xf32>
      %c0_26 = arith.constant 0 : index
      %c0_27 = arith.constant 0 : index
      %c0_28 = arith.constant 0 : index
      %64 = vector.load %arg5[%c0_26, %c0_27, %c0_28] : memref<1x8x128xf32, #tpu.memory_space<vmem>>, vector<1x8x128xf32>
      %65 = vector.shape_cast %64 : vector<1x8x128xf32> to vector<8x128xf32>
      %66 = vector.shape_cast %63 : vector<8x128xf32> to vector<1x8x128xf32>
      tpu.vector_store %arg5[%c0_26, %c0_27, %c0_28], %66 {strides = array<i32>} : memref<1x8x128xf32, #tpu.memory_space<vmem>>, vector<1x8x128xf32>,
      %c0_29 = arith.constant 0 : index
      %c0_30 = arith.constant 0 : index
      %c0_31 = arith.constant 0 : index
      %67 = vector.load %arg6[%c0_29, %c0_30, %c0_31] : memref<1x8x128xf32, #tpu.memory_space<vmem>>, vector<1x8x128xf32>
      %68 = vector.shape_cast %67 : vector<1x8x128xf32> to vector<8x128xf32>
      %cst_32 = arith.constant 0.000000e+00 : f32
      %69 = vector.broadcast %cst_32 : f32 to vector<16x128xf32>
      %70 = arith.select %46, %27, %69 : vector<16x128xi1>, vector<16x128xf32>
      %71 = vector.shape_cast %70 : vector<16x128xf32> to vector<2x8x128xf32>
      %cst_33 = arith.constant dense<0.000000e+00> : vector<8x128xf32>
      %72 = vector.multi_reduction <add>, %71, %cst_33 [0] : vector<2x8x128xf32> to vector<8x128xf32>
      %73 = arith.addf %68, %72 : vector<8x128xf32>
      %c0_34 = arith.constant 0 : index
      %c0_35 = arith.constant 0 : index
      %c0_36 = arith.constant 0 : index
      %74 = vector.load %arg6[%c0_34, %c0_35, %c0_36] : memref<1x8x128xf32, #tpu.memory_space<vmem>>, vector<1x8x128xf32>
      %75 = vector.shape_cast %74 : vector<1x8x128xf32> to vector<8x128xf32>
      %76 = vector.shape_cast %73 : vector<8x128xf32> to vector<1x8x128xf32>
      tpu.vector_store %arg6[%c0_34, %c0_35, %c0_36], %76 {strides = array<i32>} : memref<1x8x128xf32, #tpu.memory_space<vmem>>, vector<1x8x128xf32>,
    } else {
    }
    return
  }
  func.func @transform_0(%arg0: i32, %arg1: i32) -> (i32, i32) {
    %c1_i32 = arith.constant 1 : i32
    %0 = arith.muli %arg0, %c1_i32 : i32
    %1 = arith.addi %0, %arg1 : i32
    %c0_i32 = arith.constant 0 : i32
    %2 = arith.minsi %1, %c0_i32 : i32
    %c0_i32_0 = arith.constant 0 : i32
    %c0_i32_1 = arith.constant 0 : i32
    return %2, %c0_i32_0 : i32, i32
  }
  func.func @transform_1(%arg0: i32, %arg1: i32) -> (i32, i32) {
    %c1_i32 = arith.constant 1 : i32
    %0 = arith.muli %arg0, %c1_i32 : i32
    %1 = arith.addi %0, %arg1 : i32
    %c0_i32 = arith.constant 0 : i32
    %2 = arith.minsi %1, %c0_i32 : i32
    %c0_i32_0 = arith.constant 0 : i32
    %c0_i32_1 = arith.constant 0 : i32
    return %2, %c0_i32_0 : i32, i32
  }
  func.func @transform_2(%arg0: i32, %arg1: i32) -> (i32, i32, i32) {
    %c0_i32 = arith.constant 0 : i32
    %c0_i32_0 = arith.constant 0 : i32
    %c0_i32_1 = arith.constant 0 : i32
    return %arg0, %c0_i32, %c0_i32_0 : i32, i32, i32
  }
  func.func @transform_3(%arg0: i32, %arg1: i32) -> (i32, i32, i32) {
    %c0_i32 = arith.constant 0 : i32
    %c0_i32_0 = arith.constant 0 : i32
    %c0_i32_1 = arith.constant 0 : i32
    return %arg0, %c0_i32, %c0_i32_0 : i32, i32, i32
  }
  func.func @transform_4(%arg0: i32, %arg1: i32) -> (i32, i32, i32) {
    %c0_i32 = arith.constant 0 : i32
    %c0_i32_0 = arith.constant 0 : i32
    %c0_i32_1 = arith.constant 0 : i32
    return %arg0, %c0_i32, %c0_i32_0 : i32, i32, i32
  }
}

</mosaic_0001>

<llo_original>
// kernel: tpu_custom_call.1
$region0: #{tpu_custom_call.1}
  #allocation0 [shape = 'u32[]', space=smem, size = 0x4, offset = 0x4, fixed_abs, tag = 'smem constant byte address 0x4 - core index']
  #allocation1 [shape = 'u32[144,128]{1,0:T(1,128)}', space=vmem, size = 0x12000, scoped, tag = 'internal scratch']
  %s0 = inlined_call_operand.hbm [shape: f32[16,128], index: 0, kind: input, shape index: {}]
  %s1 = inlined_call_operand.hbm [shape: f32[16,128], index: 1, kind: input, shape index: {}]
  %s2 = inlined_call_operand.hbm [shape: f32[2,8,128], index: 2, kind: output, shape index: {0}]
  %s3 = inlined_call_operand.hbm [shape: f32[2,8,128], index: 3, kind: output, shape index: {1}]
  %s4 = inlined_call_operand.hbm [shape: f32[2,8,128], index: 4, kind: output, shape index: {2}]
  %5 = xla_tuple %s2, %s3, %s4
  %s6 = sld [smem:[#allocation0]]
  $region77: #{tpu_custom_call.1} parent=0
    _
  %s8 = ssub.s32 1, %s6
  %s9 = scalar_select 0, %s8, %s6
  $region1: #{tpu_custom_call.1} parent=0
    #allocation2 [shape = 'u8[16384]{0}', space=vmem, size = 0x4000, scoped, tag = 'input window, operand 0']
    #allocation3 [shape = 's32[2]{0}', space=sflag, size = 0x8, scoped, tag = 'scoped memory for tpu_custom_call.1']
    #allocation4 [shape = 's32[2]{0}', space=sflag, size = 0x8, scoped, tag = 'scoped memory for tpu_custom_call.1']
    #allocation5 [shape = 'u8[16384]{0}', space=vmem, size = 0x4000, scoped, tag = 'input window, operand 1']
    #allocation6 [shape = 's32[2]{0}', space=sflag, size = 0x8, scoped, tag = 'scoped memory for tpu_custom_call.1']
    #allocation7 [shape = 'u8[8192]{0}', space=vmem, size = 0x2000, scoped, tag = 'output window, operand 0']
    #allocation8 [shape = 'u8[8192]{0}', space=vmem, size = 0x2000, scoped, tag = 'output window, operand 1']
    #allocation9 [shape = 's32[2]{0}', space=sflag, size = 0x8, scoped, tag = 'scoped memory for tpu_custom_call.1']
    #allocation10 [shape = 'u8[8192]{0}', space=vmem, size = 0x2000, scoped, tag = 'output window, operand 2']
    %10 = vsyncpa [#allocation3], 0
    %s11 = scalar_lea.sflag [#allocation3], 1
    %12 = vsyncpa %s11, 0
    %13 = vsyncpa [#allocation6], 0
    %s14 = scalar_lea.sflag [#allocation6], 1
    %15 = vsyncpa %s14, 0
    %16 = vsyncpa [#allocation4], 0
    %s17 = scalar_lea.sflag [#allocation4], 1
    %18 = vsyncpa %s17, 0
    %19 = vsyncpa [#allocation9], 0
    %s20 = scalar_lea.sflag [#allocation9], 1
    %21 = vsyncpa %s20, 0
    loop: start=0, step=1, limit=4
    $region2: #{tpu_custom_call.1} parent=1 // loop_pre_header
      _
    $region3: #{tpu_custom_call.1} parent=1 // loop_header
      %s23 = sphi 0, %s27
      %p24 = scmp.ge.s32.totalorder %s23, 4
      %s30 = sphi 0, %s42
      %s31 = sphi 0, %s38
      %s32 = sphi 0, %s30
      %s33 = sphi 0, %s31
      %s34 = sphi 0, %s32
      %s35 = sphi 0, %s33
      %s51 = sphi 0, %s53
      %s54 = sphi 0, %s51
      %s55 = sphi 0, %s54
      %s71 = sphi 0, %s55
      %s83 = sphi 0, %s85
      %s86 = sphi 0, %s83
      %s87 = sphi 0, %s86
      %s103 = sphi 0, %s87
      %s109 = sphi 0, %s111
      %s112 = sphi 0, %s109
      %s113 = sphi 0, %s112
      %s129 = sphi 0, %s113
      %s135 = sphi 0, %s137
      %s138 = sphi 0, %s135
      %s139 = sphi 0, %s138
      %s155 = sphi 0, %s139
      %s161 = sphi 0, %s163
      %s164 = sphi 0, %s161
      %s165 = sphi 0, %s164
      %s181 = sphi 0, %s165
    $region4: #{tpu_custom_call.1} parent=1 // loop_header_branch
      %26 = sbr.rel (%p24) target = $region8
    $region5: #{tpu_custom_call.1} parent=1 // loop_body
      %s28 = ssub.s32 %s23, 1
      %s29 = ssub.s32 %s23, 2
      %s36 = sadd.s32 1, %s31
      %p37 = scmp.ge.s32.totalorder %s36, 1
      %s38 = scalar_select %p37, 0, %s36
      %s39 = sadd.s32 1, %s30
      %s40 = scalar_select %p37, %s39, %s30
      %p41 = scmp.ge.s32.totalorder %s40, 2
      %s42 = scalar_select %p41, 0, %s40
      %s43 = sadd.s32 %s30, %s31
      %p44 = scmp.lt.s32.totalorder %s43, 0
      %s45 = scalar_select %p44, %s43, 0
      %s46 = sadd.s32 %s42, %s38
      %p47 = scmp.lt.s32.totalorder %s46, 0
      %s48 = scalar_select %p47, %s46, 0
      %s49 = ssub.s32 %s45, %s48
      %p50 = scmp.eq.s32.totalorder %s49, 0
      %s52 = sadd.s32 %s51, 1
      %s53 = scalar_select %p50, %s51, %s52
      %p56 = pneg %p50
      %p57 = scmp.eq.s32.totalorder %s23, 1
      %p58 = por %p56, %p57
      %p59 = scmp.ne.s32.totalorder %s51, %s54
      %p60 = scmp.eq.s32.totalorder %s23, 0
      %p61 = por %p59, %p60
      %p62 = scmp.ne.s32.totalorder %s51, %s54
      %p63 = scmp.eq.s32.totalorder %s28, 1
      %p64 = por %p62, %p63
      %p65 = scmp.ne.s32.totalorder %s54, %s55
      %p66 = scmp.eq.s32.totalorder %s28, 0
      %p67 = por %p65, %p66
      %p68 = scmp.ne.s32.totalorder %s54, %s55
      %p69 = scmp.eq.s32.totalorder %s29, 1
      %p70 = por %p68, %p69
      %p72 = scmp.ne.s32.totalorder %s55, %s71
      %p73 = scmp.eq.s32.totalorder %s29, 0
      %p74 = por %p72, %p73
      %s75 = sadd.s32 %s30, %s31
      %p76 = scmp.lt.s32.totalorder %s75, 0
      %s77 = scalar_select %p76, %s75, 0
      %s78 = sadd.s32 %s42, %s38
      %p79 = scmp.lt.s32.totalorder %s78, 0
      %s80 = scalar_select %p79, %s78, 0
      %s81 = ssub.s32 %s77, %s80
      %p82 = scmp.eq.s32.totalorder %s81, 0
      %s84 = sadd.s32 %s83, 1
      %s85 = scalar_select %p82, %s83, %s84
      %p88 = pneg %p82
      %p89 = scmp.eq.s32.totalorder %s23, 1
      %p90 = por %p88, %p89
      %p91 = scmp.ne.s32.totalorder %s83, %s86
      %p92 = scmp.eq.s32.totalorder %s23, 0
      %p93 = por %p91, %p92
      %p94 = scmp.ne.s32.totalorder %s83, %s86
      %p95 = scmp.eq.s32.totalorder %s28, 1
      %p96 = por %p94, %p95
      %p97 = scmp.ne.s32.totalorder %s86, %s87
      %p98 = scmp.eq.s32.totalorder %s28, 0
      %p99 = por %p97, %p98
      %p100 = scmp.ne.s32.totalorder %s86, %s87
      %p101 = scmp.eq.s32.totalorder %s29, 1
      %p102 = por %p100, %p101
      %p104 = scmp.ne.s32.totalorder %s87, %s103
      %p105 = scmp.eq.s32.totalorder %s29, 0
      %p106 = por %p104, %p105
      %s107 = ssub.s32 %s30, %s42
      %p108 = scmp.eq.s32.totalorder %s107, 0
      %s110 = sadd.s32 %s109, 1
      %s111 = scalar_select %p108, %s109, %s110
      %p114 = pneg %p108
      %p115 = scmp.eq.s32.totalorder %s23, 1
      %p116 = por %p114, %p115
      %p117 = scmp.ne.s32.totalorder %s109, %s112
      %p118 = scmp.eq.s32.totalorder %s23, 0
      %p119 = por %p117, %p118
      %p120 = scmp.ne.s32.totalorder %s109, %s112
      %p121 = scmp.eq.s32.totalorder %s28, 1
      %p122 = por %p120, %p121
      %p123 = scmp.ne.s32.totalorder %s112, %s113
      %p124 = scmp.eq.s32.totalorder %s28, 0
      %p125 = por %p123, %p124
      %p126 = scmp.ne.s32.totalorder %s112, %s113
      %p127 = scmp.eq.s32.totalorder %s29, 1
      %p128 = por %p126, %p127
      %p130 = scmp.ne.s32.totalorder %s113, %s129
      %p131 = scmp.eq.s32.totalorder %s29, 0
      %p132 = por %p130, %p131
      %s133 = ssub.s32 %s30, %s42
      %p134 = scmp.eq.s32.totalorder %s133, 0
      %s136 = sadd.s32 %s135, 1
      %s137 = scalar_select %p134, %s135, %s136
      %p140 = pneg %p134
      %p141 = scmp.eq.s32.totalorder %s23, 1
      %p142 = por %p140, %p141
      %p143 = scmp.ne.s32.totalorder %s135, %s138
      %p144 = scmp.eq.s32.totalorder %s23, 0
      %p145 = por %p143, %p144
      %p146 = scmp.ne.s32.totalorder %s135, %s138
      %p147 = scmp.eq.s32.totalorder %s28, 1
      %p148 = por %p146, %p147
      %p149 = scmp.ne.s32.totalorder %s138, %s139
      %p150 = scmp.eq.s32.totalorder %s28, 0
      %p151 = por %p149, %p150
      %p152 = scmp.ne.s32.totalorder %s138, %s139
      %p153 = scmp.eq.s32.totalorder %s29, 1
      %p154 = por %p152, %p153
      %p156 = scmp.ne.s32.totalorder %s139, %s155
      %p157 = scmp.eq.s32.totalorder %s29, 0
      %p158 = por %p156, %p157
      %s159 = ssub.s32 %s30, %s42
      %p160 = scmp.eq.s32.totalorder %s159, 0
      %s162 = sadd.s32 %s161, 1
      %s163 = scalar_select %p160, %s161, %s162
      %p166 = pneg %p160
      %p167 = scmp.eq.s32.totalorder %s23, 1
      %p168 = por %p166, %p167
      %p169 = scmp.ne.s32.totalorder %s161, %s164
      %p170 = scmp.eq.s32.totalorder %s23, 0
      %p171 = por %p169, %p170
      %p172 = scmp.ne.s32.totalorder %s161, %s164
      %p173 = scmp.eq.s32.totalorder %s28, 1
      %p174 = por %p172, %p173
      %p175 = scmp.ne.s32.totalorder %s164, %s165
      %p176 = scmp.eq.s32.totalorder %s28, 0
      %p177 = por %p175, %p176
      %p178 = scmp.ne.s32.totalorder %s164, %s165
      %p179 = scmp.eq.s32.totalorder %s29, 1
      %p180 = por %p178, %p179
      %p182 = scmp.ne.s32.totalorder %s165, %s181
      %p183 = scmp.eq.s32.totalorder %s29, 0
      %p184 = por %p182, %p183
      %p185 = scmp.le.s32.totalorder 1, %s23
      %p186 = scmp.lt.s32.totalorder %s23, 3
      %p187 = pnand %p185, %p186
      %p188 = pneg %p187
      // Predicated region
      $region9: #{tpu_custom_call.1} parent=5 // pred_check
        _
      $region10: #{tpu_custom_call.1} parent=5 // pred_check_branch
        %190 = sbr.rel (%p187) target = $region12
      $region11: #{tpu_custom_call.1} parent=5 // pred_region
        %s191 = ssub.s32 %s23, 1
      $region12: #{tpu_custom_call.1} parent=5 // pred_fallthru
        _
      %p192 = scmp.lt.s32.totalorder %s23, 2
      // Predicated region
      $region13: #{tpu_custom_call.1} parent=5 // pred_check
        %p193 = pneg %p192
      $region14: #{tpu_custom_call.1} parent=5 // pred_check_branch
        %195 = sbr.rel (%p193) target = $region16
      $region15: #{tpu_custom_call.1} parent=5 // pred_region
        // Predicated region
        $region17: #{tpu_custom_call.1} parent=15 // pred_check
          %p196 = pneg %p61
        $region18: #{tpu_custom_call.1} parent=15 // pred_check_branch
          %198 = sbr.rel (%p196) target = $region20
        $region19: #{tpu_custom_call.1} parent=15 // pred_region
          %s199 = sand.u32 %s51, 1
          %s200 = scalar_lea.sflag [#allocation3], %s199
          %s201 = sand.u32 %s51, 1
          %s202 = smul.addr %s201, 16
          %s203 = scalar_lea.vmem [#allocation2], %s202
          %s204 = sadd.s32 %s30, %s31
          %p205 = scmp.lt.s32.totalorder %s204, 0
          %s206 = scalar_select %p205, %s204, 0
          %s207 = smul.u32 2, %s206
          %s209 = ssub.s32 256, 256
          %210 = vsyncadd %s200, %s209
          %s211 = smul.addr %s207, 128
          %s212 = scalar_lea.hbm %s0, %s211
          %s213 = sshll.u32 %s203, 4
          %s214 = int_to_ptr.vmem [resolvable:$true] %s213
          %219 = dma.hbm_to_vmem [thread:$0]  %s212, 256, %s214, %s200, 128, 128, 8
        $region20: #{tpu_custom_call.1} parent=15 // pred_fallthru
          _
        // Predicated region
        $region21: #{tpu_custom_call.1} parent=15 // pred_check
          %p220 = pneg %p93
        $region22: #{tpu_custom_call.1} parent=15 // pred_check_branch
          %222 = sbr.rel (%p220) target = $region24
        $region23: #{tpu_custom_call.1} parent=15 // pred_region
          %s223 = sand.u32 %s83, 1
          %s224 = scalar_lea.sflag [#allocation6], %s223
          %s225 = sand.u32 %s83, 1
          %s226 = smul.addr %s225, 16
          %s227 = scalar_lea.vmem [#allocation5], %s226
          %s228 = sadd.s32 %s30, %s31
          %p229 = scmp.lt.s32.totalorder %s228, 0
          %s230 = scalar_select %p229, %s228, 0
          %s231 = smul.u32 2, %s230
          %s233 = ssub.s32 256, 256
          %234 = vsyncadd %s224, %s233
          %s235 = smul.addr %s231, 128
          %s236 = scalar_lea.hbm %s1, %s235
          %s237 = sshll.u32 %s227, 4
          %s238 = int_to_ptr.vmem [resolvable:$true] %s237
          %243 = dma.hbm_to_vmem [thread:$0]  %s236, 256, %s238, %s224, 128, 128, 8
        $region24: #{tpu_custom_call.1} parent=15 // pred_fallthru
          _
      $region16: #{tpu_custom_call.1} parent=5 // pred_fallthru
        _
      %p244 = scmp.le.s32.totalorder 1, %s23
      %p245 = scmp.lt.s32.totalorder %s23, 3
      %p246 = pnand %p244, %p245
      %p247 = pneg %p246
      // Predicated region
      $region25: #{tpu_custom_call.1} parent=5 // pred_check
        _
      $region26: #{tpu_custom_call.1} parent=5 // pred_check_branch
        %249 = sbr.rel (%p246) target = $region28
      $region27: #{tpu_custom_call.1} parent=5 // pred_region
        %s250 = ssub.s32 %s23, 1
        %s251 = sand.u32 %s54, 1
        %s252 = scalar_lea.sflag [#allocation3], %s251
        %s253 = sand.u32 %s54, 1
        %s254 = smul.addr %s253, 16
        %s255 = scalar_lea.vmem [#allocation2], %s254
        // Predicated region
        $region29: #{tpu_custom_call.1} parent=27 // pred_check
          %p256 = pneg %p67
        $region30: #{tpu_custom_call.1} parent=27 // pred_check_branch
          %258 = sbr.rel (%p256) target = $region32
        $region31: #{tpu_custom_call.1} parent=27 // pred_region
          %259 = dma.done %s252, 256
        $region32: #{tpu_custom_call.1} parent=27 // pred_fallthru
          _
        %s260 = sand.u32 %s86, 1
        %s261 = scalar_lea.sflag [#allocation6], %s260
        %s262 = sand.u32 %s86, 1
        %s263 = smul.addr %s262, 16
        %s264 = scalar_lea.vmem [#allocation5], %s263
        // Predicated region
        $region33: #{tpu_custom_call.1} parent=27 // pred_check
          %p265 = pneg %p99
        $region34: #{tpu_custom_call.1} parent=27 // pred_check_branch
          %267 = sbr.rel (%p265) target = $region36
        $region35: #{tpu_custom_call.1} parent=27 // pred_region
          %268 = dma.done %s261, 256
        $region36: #{tpu_custom_call.1} parent=27 // pred_fallthru
          _
        %s269 = sand.u32 %s54, 1
        %s270 = scalar_lea.sflag [#allocation3], %s269
        %s271 = sand.u32 %s54, 1
        %s272 = smul.addr %s271, 16
        %s273 = scalar_lea.vmem [#allocation2], %s272
        %p274 = pneg %p67
        %p275 = pneg %p64
        %s276 = sand.u32 %s86, 1
        %s277 = scalar_lea.sflag [#allocation6], %s276
        %s278 = sand.u32 %s86, 1
        %s279 = smul.addr %s278, 16
        %s280 = scalar_lea.vmem [#allocation5], %s279
        %p281 = pneg %p99
        %p282 = pneg %p96
        %p283 = pneg %p125
        %p284 = pneg %p122
        %s285 = sand.u32 %s112, 1
        %s286 = scalar_lea.sflag [#allocation4], %s285
        %s287 = sand.u32 %s112, 1
        %s288 = smul.addr %s287, 8
        %s289 = scalar_lea.vmem [#allocation7], %s288
        %p290 = pneg %p151
        %p291 = pneg %p148
        %s292 = sand.u32 %s28, 1
        %s293 = scalar_lea.sflag [#allocation9], %s292
        %s294 = sand.u32 %s138, 1
        %s295 = smul.addr %s294, 8
        %s296 = scalar_lea.vmem [#allocation8], %s295
        %p297 = pneg %p177
        %p298 = pneg %p174
        %s299 = sand.u32 %s28, 1
        %s300 = scalar_lea.sflag [#allocation9], %s299
        %s301 = sand.u32 %s164, 1
        %s302 = smul.addr %s301, 8
        %s303 = scalar_lea.vmem [#allocation10], %s302
        %s304 = sadd.s32 %s32, %s33
        %p305 = scmp.lt.s32.totalorder %s304, 0
        %s306 = scalar_select %p305, %s304, 0
        %s307 = smul.u32 2, %s306
        %s308 = sadd.s32 %s32, %s33
        %p309 = scmp.lt.s32.totalorder %s308, 0
        %s310 = scalar_select %p309, %s308, 0
        %s311 = smul.u32 2, %s310
        %p312 = scmp.eq.s32.totalorder %s33, 0
        // Predicated region
        $region37: #{tpu_custom_call.1} parent=27 // pred_check
          %p313 = pneg %p312
        $region38: #{tpu_custom_call.1} parent=27 // pred_check_branch
          %315 = sbr.rel (%p313) target = $region40
        $region39: #{tpu_custom_call.1} parent=27 // pred_region
          %316 = vst [vmem:[%s289] sm:$0xff] 0.0
          %317 = vst [vmem:[%s296] sm:$0xff] 0.0
          %318 = vst [vmem:[%s303] sm:$0xff] 0.0
        $region40: #{tpu_custom_call.1} parent=27 // pred_fallthru
          _
        %v319 = vld [vmem:[%s255] sm:$0xff]
        %v320 = vld [vmem:[%s255 + $0x8] sm:$0xff]
        %v321 = vld [vmem:[%s264] sm:$0xff]
        %v322 = vld [vmem:[%s264 + $0x8] sm:$0xff]
        %v323 = vand.u32 2147483647, %v319
        %v324 = vand.u32 2147483647, %v320
        %v325 = vsub.f32 0.0, %v323
        %v326 = vsub.f32 0.0, %v324
        %v327 = vmul.f32 %v325, 1.442695
        %v328 = vpow.pop %v327
        %v329 = vmul.f32 %v326, 1.442695
        %v330 = vpow.pop %v329
        %v331 = vadd.f32 %v328, 1.0
        %v332 = vadd.f32 %v330, 1.0
        %v333 = vrcp.pop %v331
        %v334 = vrcp.pop %v332
        %v335 = vmul.f32 %v331, %v333
        %v336 = vmul.f32 %v332, %v334
        %v337 = vsub.f32 2.0, %v335
        %v338 = vsub.f32 2.0, %v336
        %v339 = vmul.f32 %v333, %v337
        %v340 = vmul.f32 %v334, %v338
        %vm341 = vcmp.ge.f32.partialorder %v319, 0.0
        %vm342 = vcmp.ge.f32.partialorder %v320, 0.0
        %v343 = vmul.f32 %v328, %v339
        %v344 = vmul.f32 %v330, %v340
        %v345 = vsel %vm341, %v339, %v343
        %v346 = vsel %vm342, %v340, %v344
        %v347 = vmax.f32 %v319, 0.0
        %v348 = vmax.f32 %v320, 0.0
        %v349 = vmul.f32 %v319, %v321
        %v350 = vmul.f32 %v320, %v322
        %v351 = vsub.f32 %v347, %v349
        %v352 = vsub.f32 %v348, %v350
        %v353 = vadd.f32 %v328, 1.0
        %v354 = vlog2.pop %v353
        %v355 = vmul.f32 %v354, 0.6931472
        %v356 = vmul.f32 -0.5, %v328
        %v357 = vadd.f32 %v356, 1.0
        %v358 = vmul.f32 %v357, %v328
        %v359 = vand.u32 2147483647, %v328
        %vm360 = vcmp.lt.f32.partialorder %v359, 0.0004427343
        %v361 = vsel %vm360, %v358, %v355
        %v362 = vadd.f32 %v330, 1.0
        %v363 = vlog2.pop %v362
        %v364 = vmul.f32 %v363, 0.6931472
        %v365 = vmul.f32 -0.5, %v330
        %v366 = vadd.f32 %v365, 1.0
        %v367 = vmul.f32 %v366, %v330
        %v368 = vand.u32 2147483647, %v330
        %vm369 = vcmp.lt.f32.partialorder %v368, 0.0004427343
        %v370 = vsel %vm369, %v367, %v364
        %v371 = vadd.f32 %v351, %v361
        %v372 = vadd.f32 %v352, %v370
        %v373 = vmul.f32 %v345, %v321
        %v374 = vmul.f32 %v346, %v322
        %v375 = vadd.f32 %v345, %v321
        %v376 = vadd.f32 %v346, %v322
        %s377 = sadd.s32 %s32, %s33
        %s378 = smul.u32 %s377, 2048
        %s379 = sadd.s32 %s378, 2048
        %p380 = scmp.le.s32.totalorder %s379, 2048
        // Predicated region
        $region41: #{tpu_custom_call.1} parent=27 // pred_check
          %p381 = pneg %p380
        $region42: #{tpu_custom_call.1} parent=27 // pred_check_branch
          %383 = sbr.rel (%p381) target = $region44
        $region43: #{tpu_custom_call.1} parent=27 // pred_region
          %v384 = vld [vmem:[%s289] sm:$0xff]
          %v385 = vadd.f32 %v371, %v372
          %v386 = vadd.f32 %v384, %v385
          %387 = vst [vmem:[%s289] sm:$0xff] %v386
          %v388 = vld [vmem:[%s296] sm:$0xff]
          %v389 = vadd.f32 %v373, %v374
          %v390 = vadd.f32 %v388, %v389
          %391 = vst [vmem:[%s296] sm:$0xff] %v390
          %v392 = vld [vmem:[%s303] sm:$0xff]
          %v393 = vadd.f32 %v375, %v376
          %v394 = vadd.f32 %v392, %v393
          %395 = vst [vmem:[%s303] sm:$0xff] %v394
        $region44: #{tpu_custom_call.1} parent=27 // pred_fallthru
          _
        %p396 = scmp.gt.s32.totalorder %s379, 2048
        // Predicated region
        $region45: #{tpu_custom_call.1} parent=27 // pred_check
          %p397 = pneg %p396
        $region46: #{tpu_custom_call.1} parent=27 // pred_check_branch
          %399 = sbr.rel (%p397) target = $region48
        $region47: #{tpu_custom_call.1} parent=27 // pred_region
          %v400 = vlaneseq
          %v401 = vshrl.u32 %v400, 7
          %v402 = vadd.s32 %v401, 8
          %v403 = vlaneseq
          %v404 = vand.u32 %v403, 127
          %v405 = vmul.u32 %v401, 128
          %v406 = vmul.u32 %v402, 128
          %v407 = vstv %s378
          %v408 = vadd.s32 %v407, %v405
          %v409 = vadd.s32 %v407, %v406
          %v410 = vadd.s32 %v408, %v404
          %v411 = vadd.s32 %v409, %v404
          %vm412 = vcmp.lt.s32.totalorder %v410, 2048
          %vm413 = vcmp.lt.s32.totalorder %v411, 2048
          %v414 = vld [vmem:[%s289] sm:$0xff]
          %v415 = vsel %vm412, %v371, 0.0
          %v416 = vsel %vm413, %v372, 0.0
          %v417 = vadd.f32 %v415, %v416
          %v418 = vadd.f32 %v414, %v417
          %419 = vst [vmem:[%s289] sm:$0xff] %v418
          %v420 = vld [vmem:[%s296] sm:$0xff]
          %v421 = vsel %vm412, %v373, 0.0
          %v422 = vsel %vm413, %v374, 0.0
          %v423 = vadd.f32 %v421, %v422
          %v424 = vadd.f32 %v420, %v423
          %425 = vst [vmem:[%s296] sm:$0xff] %v424
          %v426 = vld [vmem:[%s303] sm:$0xff]
          %v427 = vsel %vm412, %v375, 0.0
          %v428 = vsel %vm413, %v376, 0.0
          %v429 = vadd.f32 %v427, %v428
          %v430 = vadd.f32 %v426, %v429
          %431 = vst [vmem:[%s303] sm:$0xff] %v430
        $region48: #{tpu_custom_call.1} parent=27 // pred_fallthru
          _
        %s432 = sand.u32 %s112, 1
        %s433 = scalar_lea.sflag [#allocation4], %s432
        %s434 = sand.u32 %s112, 1
        %s435 = smul.addr %s434, 8
        %s436 = scalar_lea.vmem [#allocation7], %s435
        %s437 = sand.u32 %s28, 1
        %s438 = scalar_lea.sflag [#allocation9], %s437
        %s439 = sand.u32 %s138, 1
        %s440 = smul.addr %s439, 8
        %s441 = scalar_lea.vmem [#allocation8], %s440
        %s442 = sand.u32 %s28, 1
        %s443 = scalar_lea.sflag [#allocation9], %s442
        %s444 = sand.u32 %s164, 1
        %s445 = smul.addr %s444, 8
        %s446 = scalar_lea.vmem [#allocation10], %s445
        // Predicated region
        $region49: #{tpu_custom_call.1} parent=27 // pred_check
          %p447 = pneg %p122
        $region50: #{tpu_custom_call.1} parent=27 // pred_check_branch
          %449 = sbr.rel (%p447) target = $region52
        $region51: #{tpu_custom_call.1} parent=27 // pred_region
          %s451 = ssub.s32 128, 128
          %452 = vsyncadd %s433, %s451
          %s453 = smul.addr %s32, 128
          %s454 = scalar_lea.hbm %s2, %s453
          %s456 = sshll.u32 %s436, 4
          %s457 = int_to_ptr.vmem [resolvable:$true] %s456
          %459 = dma.vmem_to_hbm [thread:$0]  %s457, 128, %s454, %s433
        $region52: #{tpu_custom_call.1} parent=27 // pred_fallthru
          _
        // Predicated region
        $region53: #{tpu_custom_call.1} parent=27 // pred_check
          %p460 = pneg %p148
        $region54: #{tpu_custom_call.1} parent=27 // pred_check_branch
          %462 = sbr.rel (%p460) target = $region56
        $region55: #{tpu_custom_call.1} parent=27 // pred_region
          %s464 = ssub.s32 128, 128
          %465 = vsyncadd %s438, %s464
          %s466 = smul.addr %s32, 128
          %s467 = scalar_lea.hbm %s3, %s466
          %s469 = sshll.u32 %s441, 4
          %s470 = int_to_ptr.vmem [resolvable:$true] %s469
          %472 = dma.vmem_to_hbm [thread:$0]  %s470, 128, %s467, %s438
        $region56: #{tpu_custom_call.1} parent=27 // pred_fallthru
          _
        // Predicated region
        $region57: #{tpu_custom_call.1} parent=27 // pred_check
          %p473 = pneg %p174
        $region58: #{tpu_custom_call.1} parent=27 // pred_check_branch
          %475 = sbr.rel (%p473) target = $region60
        $region59: #{tpu_custom_call.1} parent=27 // pred_region
          %s477 = ssub.s32 128, 128
          %478 = vsyncadd %s443, %s477
          %s479 = smul.addr %s32, 128
          %s480 = scalar_lea.hbm %s4, %s479
          %s482 = sshll.u32 %s446, 4
          %s483 = int_to_ptr.vmem [resolvable:$true] %s482
          %485 = dma.vmem_to_hbm [thread:$0]  %s483, 128, %s480, %s443
        $region60: #{tpu_custom_call.1} parent=27 // pred_fallthru
          _
      $region28: #{tpu_custom_call.1} parent=5 // pred_fallthru
        _
      %p486 = scmp.le.s32.totalorder 2, %s23
      // Predicated region
      $region61: #{tpu_custom_call.1} parent=5 // pred_check
        %p487 = pneg %p486
      $region62: #{tpu_custom_call.1} parent=5 // pred_check_branch
        %489 = sbr.rel (%p487) target = $region64
      $region63: #{tpu_custom_call.1} parent=5 // pred_region
        %s490 = ssub.s32 %s23, 2
        // Predicated region
        $region65: #{tpu_custom_call.1} parent=63 // pred_check
          %p491 = pneg %p128
        $region66: #{tpu_custom_call.1} parent=63 // pred_check_branch
          %493 = sbr.rel (%p491) target = $region68
        $region67: #{tpu_custom_call.1} parent=63 // pred_region
          %s494 = sand.u32 %s113, 1
          %s495 = scalar_lea.sflag [#allocation4], %s494
          %s496 = sand.u32 %s113, 1
          %s497 = smul.addr %s496, 8
          %s498 = scalar_lea.vmem [#allocation7], %s497
          %499 = dma.done %s495, 128
        $region68: #{tpu_custom_call.1} parent=63 // pred_fallthru
          _
        // Predicated region
        $region69: #{tpu_custom_call.1} parent=63 // pred_check
          %p500 = pneg %p154
        $region70: #{tpu_custom_call.1} parent=63 // pred_check_branch
          %502 = sbr.rel (%p500) target = $region72
        $region71: #{tpu_custom_call.1} parent=63 // pred_region
          %s503 = sand.u32 %s29, 1
          %s504 = scalar_lea.sflag [#allocation9], %s503
          %s505 = sand.u32 %s139, 1
          %s506 = smul.addr %s505, 8
          %s507 = scalar_lea.vmem [#allocation8], %s506
          %508 = dma.done %s504, 128
        $region72: #{tpu_custom_call.1} parent=63 // pred_fallthru
          _
        // Predicated region
        $region73: #{tpu_custom_call.1} parent=63 // pred_check
          %p509 = pneg %p180
        $region74: #{tpu_custom_call.1} parent=63 // pred_check_branch
          %511 = sbr.rel (%p509) target = $region76
        $region75: #{tpu_custom_call.1} parent=63 // pred_region
          %s512 = sand.u32 %s29, 1
          %s513 = scalar_lea.sflag [#allocation9], %s512
          %s514 = sand.u32 %s165, 1
          %s515 = smul.addr %s514, 8
          %s516 = scalar_lea.vmem [#allocation10], %s515
          %517 = dma.done %s513, 128
        $region76: #{tpu_custom_call.1} parent=63 // pred_fallthru
          _
      $region64: #{tpu_custom_call.1} parent=5 // pred_fallthru
        _
    $region6: #{tpu_custom_call.1} parent=1 // loop_footer
      %s27 = sadd.s32 1, %s23
    $region7: #{tpu_custom_call.1} parent=1 // loop_footer_branch
      %22 = sbr.rel target = $region3
    $region8: #{tpu_custom_call.1} parent=1 // loop_exit
      _
    %518 = vsyncpa [#allocation3], 1
    %s519 = scalar_lea.sflag [#allocation3], 1
    %520 = vsyncpa %s519, 1
    %521 = vsyncpa [#allocation6], 1
    %s522 = scalar_lea.sflag [#allocation6], 1
    %523 = vsyncpa %s522, 1
    %524 = vsyncpa [#allocation4], 1
    %s525 = scalar_lea.sflag [#allocation4], 1
    %526 = vsyncpa %s525, 1
    %527 = vsyncpa [#allocation9], 1
    %s528 = scalar_lea.sflag [#allocation9], 1
    %529 = vsyncpa %s528, 1

</llo_original>
